<compile_context>
chip_gen: v6e
topology: v6e:2x2x1
jax: 0.10.0
libtpu: 0.0.40
codegen_flags: <defaults>
</compile_context>

<pallas_src>
import jax
import jax.numpy as jnp
from jax.experimental import pallas as pl
from jax.experimental.pallas import tpu as pltpu

HIDDEN = 64      # hidden width fixed by the module
PAD = 128        # lane-dense width the hidden layers are padded to


def _round_up(x, m):
    return ((x + m - 1) // m) * m


def _ceil_div(a, b):
    return -(-a // b)


# ----------------------------------------------------------------------------
# Pallas kernel: fused trunk  (tanh(tanh(x@W1+b1)@W2+b2))@W3+b3  -> narrow head
# ----------------------------------------------------------------------------
def mlp_shared_kernel(x_ref,
                      w1_ref, b1_ref,
                      w2_ref, b2_ref,
                      w3_ref, b3_ref,
                      out_ref):
    # Input arrives as f32; cast to the matmul operand dtype in-kernel (free
    # VPU work under this memory-bound regime). Accumulate in f32 on the MXU.
    x = x_ref[...].astype(w1_ref.dtype)
    h1 = jnp.tanh(
        jnp.dot(x, w1_ref[...], preferred_element_type=jnp.float32)
        + b1_ref[...]
    )
    h2 = jnp.tanh(
        jnp.dot(h1.astype(w2_ref.dtype), w2_ref[...],
                preferred_element_type=jnp.float32)
        + b2_ref[...]
    )
    # Narrow head matmul: N = round_up(1+A, 8) lanes. Only the useful head
    # values hit HBM (f32 kept for the value column's precision).
    out = (
        jnp.dot(h2.astype(w3_ref.dtype), w3_ref[...],
                preferred_element_type=jnp.float32)
        + b3_ref[...]
    )
    out_ref[...] = out.astype(out_ref.dtype)


# ----------------------------------------------------------------------------
# Wrapper
# ----------------------------------------------------------------------------
def mlp_base_shared_forward(inputs, states, masks, packed, *, tile_b=4096):
    """Mirrors MLPBaseShared.forward: returns (value, q_vals, states).

    `masks` is unused by the non-recurrent forward, matching the reference.
    `packed` comes from pack_params() (lane-padded, optionally bf16 weights).
    """
    del masks
    B, D = inputs.shape
    A1 = packed["head_dim"]            # 1 + num_actions (useful head width)
    HP = packed["b3"].shape[1]         # padded head width (multiple of 8)

    # Adaptive batch tiling:
    #   - big tiles (default 4096) to amortize the ~0.35 us/step overhead,
    #   - keep >= 2 grid steps at large batch so both v7x TensorCores are used,
    #   - choose tb from the step count so batch padding stays < 16 rows/step.
    n = max(_ceil_div(B, tile_b), 1)
    if n == 1 and B >= 2048:
        n = 2                          # megacore: don't collapse to one step
    tb = _round_up(_ceil_div(B, n), 16)
    Bp = n * tb

    x = inputs
    if Bp != B:
        x = jnp.pad(x, ((0, Bp - B), (0, 0)))

    out = pl.pallas_call(
        mlp_shared_kernel,
        out_shape=jax.ShapeDtypeStruct((Bp, HP), jnp.float32),
        grid=(n,),
        in_specs=[
            pl.BlockSpec((tb, D), lambda i: (i, 0)),      # x: tiled over batch
            pl.BlockSpec((D, PAD), lambda i: (0, 0)),     # W1 (resident)
            pl.BlockSpec((1, PAD), lambda i: (0, 0)),     # b1
            pl.BlockSpec((PAD, PAD), lambda i: (0, 0)),   # W2 (resident)
            pl.BlockSpec((1, PAD), lambda i: (0, 0)),     # b2
            pl.BlockSpec((PAD, HP), lambda i: (0, 0)),    # W3 (resident, narrow)
            pl.BlockSpec((1, HP), lambda i: (0, 0)),      # b3
        ],
        out_specs=pl.BlockSpec((tb, HP), lambda i: (i, 0)),
        compiler_params=pltpu.CompilerParams(
            dimension_semantics=("parallel",),
            # Explicit request: covers v5e's 16 MiB scoped default; ~12 MiB
            # actually used at tb=4096 (see header comment).
            vmem_limit_bytes=32 * 1024 * 1024,
        ),
    )(x, packed["w1"], packed["b1"], packed["w2"], packed["b2"],
      packed["w3"], packed["b3"])

    # Single narrow slice of the (Bp, HP) head buffer; value/q split from it.
    head = out[:B, :A1]
    value = head[:, :1]
    q_vals = head[:, 1:]
    return value, q_vals, states


# ----------------------------------------------------------------------------
# Parameter init (replicates init_normc_ + zero biases) and packing
# ----------------------------------------------------------------------------
def init_normc(key, out_features, in_features):
    """PyTorch init_normc_: W ~ N(0,1) (shape (out,in)), rows L2-normalized.
    Returned transposed to (in, out) for the y = x @ W convention."""
    w = jax.random.normal(key, (out_features, in_features), dtype=jnp.float32)
    w = w / jnp.sqrt(jnp.sum(w * w, axis=1, keepdims=True))
    return w.T


def make_raw_params(key, num_inputs, num_actions, std=0.0):
    k1, k2, k3 = jax.random.split(key, 3)
    return {
        "w1": init_normc(k1, HIDDEN, num_inputs),
        "b1": jnp.zeros((1, HIDDEN), jnp.float32),
        "w2": init_normc(k2, HIDDEN, HIDDEN),
        "b2": jnp.zeros((1, HIDDEN), jnp.float32),
        "w3": init_normc(k3, 1 + num_actions, HIDDEN),
        "b3": jnp.zeros((1, 1 + num_actions), jnp.float32),
        # log_std is a module parameter but is not used in forward().
        "log_std": jnp.ones((1, num_actions), jnp.float32) * std,
    }


def pack_params(raw, compute_dtype=jnp.bfloat16):
    """One-time packing:
      - hidden widths padded to 128 lanes (zeros) -> full-width MXU matmuls,
      - head width padded only to a multiple of 8 -> tiny output HBM footprint,
      - weights cast to `compute_dtype` (bf16 works on v5e/v6e/v7x MXUs),
        biases kept f32 (bias add / tanh run in f32 on the VPU/EUP)."""
    D = raw["w1"].shape[0]
    A1 = raw["w3"].shape[1]            # 1 + num_actions
    HP = _round_up(A1, 8)

    w1p = jnp.zeros((D, PAD), jnp.float32).at[:, :HIDDEN].set(raw["w1"])
    b1p = jnp.zeros((1, PAD), jnp.float32).at[:, :HIDDEN].set(raw["b1"])
    w2p = jnp.zeros((PAD, PAD), jnp.float32).at[:HIDDEN, :HIDDEN].set(raw["w2"])
    b2p = jnp.zeros((1, PAD), jnp.float32).at[:, :HIDDEN].set(raw["b2"])
    w3p = jnp.zeros((PAD, HP), jnp.float32).at[:HIDDEN, :A1].set(raw["w3"])
    b3p = jnp.zeros((1, HP), jnp.float32).at[:, :A1].set(raw["b3"])

    return {
        "w1": w1p.astype(compute_dtype), "b1": b1p,
        "w2": w2p.astype(compute_dtype), "b2": b2p,
        "w3": w3p.astype(compute_dtype), "b3": b3p,
        "head_dim": A1,
        "num_actions": A1 - 1,
    }


# ----------------------------------------------------------------------------
# Pure-JAX reference (unpadded, true f32) for correctness checks
# ----------------------------------------------------------------------------
def reference_forward(inputs, states, masks, raw):
    hi = jax.lax.Precision.HIGHEST
    h = jnp.tanh(jnp.dot(inputs, raw["w1"], precision=hi) + raw["b1"])
    h = jnp.tanh(jnp.dot(h, raw["w2"], precision=hi) + raw["b2"])
    out = jnp.dot(h, raw["w3"], precision=hi) + raw["b3"]
    return out[:, 0:1], out[:, 1:], states


if __name__ == "__main__":
    key = jax.random.PRNGKey(0)
    k_params, k_x, k_s, k_x2 = jax.random.split(key, 4)

    B = 8             # batch
    NUM_INPUTS = 32   # num_inputs
    NUM_ACTIONS = 6   # num_actions
    STATE_SIZE = 1    # MLPBaseShared.state_size

    raw = make_raw_params(k_params, NUM_INPUTS, NUM_ACTIONS)
    inputs = jax.random.normal(k_x, (B, NUM_INPUTS), dtype=jnp.float32)
    states = jax.random.normal(k_s, (B, STATE_SIZE), dtype=jnp.float32)
    masks = jnp.ones((B, 1), dtype=jnp.float32)  # unused by forward

    v_ref, q_ref, s_ref = reference_forward(inputs, states, masks, raw)

    # --- f32-operand path -------------------------------------------------
    # NOTE: jnp.dot with f32 operands and default precision uses the MXU's
    # bf16-pass mode, so this is ~bf16-pass accurate, not bit-exact f32; the
    # 2e-3 tolerance reflects that (documented, not masked).
    packed_f32 = pack_params(raw, compute_dtype=jnp.float32)
    v32, q32, s32 = mlp_base_shared_forward(inputs, states, masks, packed_f32)
    jax.block_until_ready((v32, q32, s32))
    assert v32.shape == (B, 1)
    assert q32.shape == (B, NUM_ACTIONS)
    assert jnp.allclose(v32, v_ref, atol=2e-3), "value mismatch (f32 path)"
    assert jnp.allclose(q32, q_ref, atol=2e-3), "q_vals mismatch (f32 path)"
    assert jnp.allclose(s32, s_ref)

    # --- bf16 operand / f32 accumulate path (default, all TPU generations) --
    # TODO(synk): confirm bf16 quantization of observations/weights is
    # acceptable for the downstream RL loss; outputs stay f32 here.
    packed_bf16 = pack_params(raw, compute_dtype=jnp.bfloat16)
    v16, q16, _ = mlp_base_shared_forward(inputs, states, masks, packed_bf16)
    jax.block_until_ready((v16, q16))
    assert jnp.allclose(v16, v_ref, atol=5e-2), "value mismatch (bf16 path)"
    assert jnp.allclose(q16, q_ref, atol=5e-2), "q_vals mismatch (bf16 path)"

    # --- multi-step grid / adaptive-tiling path (exercise index_map + pad) --
    B2 = 300
    inputs2 = jax.random.normal(k_x2, (B2, NUM_INPUTS), dtype=jnp.float32)
    states2 = jnp.zeros((B2, STATE_SIZE), jnp.float32)
    v_ref2, q_ref2, _ = reference_forward(inputs2, states2, None, raw)
    v2, q2, _ = mlp_base_shared_forward(inputs2, states2, None, packed_bf16,
                                        tile_b=128)
    jax.block_until_ready((v2, q2))
    assert v2.shape == (B2, 1) and q2.shape == (B2, NUM_ACTIONS)
    assert jnp.allclose(v2, v_ref2, atol=5e-2), "value mismatch (tiled path)"
    assert jnp.allclose(q2, q_ref2, atol=5e-2), "q_vals mismatch (tiled path)"

    print("KERNEL_OK")
</pallas_src>

<mosaic_0001>
module attributes {stable_mosaic.version = 11 : i64} {
  func.func @mlp_shared_kernel(%arg0: i32, %arg1: memref<16x32xf32, #tpu.memory_space<vmem>>, %arg2: memref<32x128xf32, #tpu.memory_space<vmem>>, %arg3: memref<1x128xf32, #tpu.memory_space<vmem>>, %arg4: memref<128x128xf32, #tpu.memory_space<vmem>>, %arg5: memref<1x128xf32, #tpu.memory_space<vmem>>, %arg6: memref<128x8xf32, #tpu.memory_space<vmem>>, %arg7: memref<1x8xf32, #tpu.memory_space<vmem>>, %arg8: memref<16x8xf32, #tpu.memory_space<vmem>>) attributes {dimension_semantics = [#tpu.dimension_semantics<parallel>], iteration_bounds = array<i64: 1>, scalar_prefetch = 0 : i64, scratch_operands = 0 : i64, tpu.core_type = #tpu.core_type<tc>, window_params = [{transform_indices = @transform_0, window_bounds = array<i64: 16, 32>}, {pipeline_mode = #tpu.pipeline_mode<synchronous>, transform_indices = @transform_1, window_bounds = array<i64: 32, 128>}, {pipeline_mode = #tpu.pipeline_mode<synchronous>, transform_indices = @transform_2, window_bounds = array<i64: 1, 128>}, {pipeline_mode = #tpu.pipeline_mode<synchronous>, transform_indices = @transform_3, window_bounds = array<i64: 128, 128>}, {pipeline_mode = #tpu.pipeline_mode<synchronous>, transform_indices = @transform_4, window_bounds = array<i64: 1, 128>}, {pipeline_mode = #tpu.pipeline_mode<synchronous>, transform_indices = @transform_5, window_bounds = array<i64: 128, 8>}, {pipeline_mode = #tpu.pipeline_mode<synchronous>, transform_indices = @transform_6, window_bounds = array<i64: 1, 8>}, {transform_indices = @transform_7, window_bounds = array<i64: 16, 8>}]} {
    %c0 = arith.constant 0 : index
    %c0_0 = arith.constant 0 : index
    %0 = vector.load %arg1[%c0, %c0_0] : memref<16x32xf32, #tpu.memory_space<vmem>>, vector<16x32xf32>
    %c0_1 = arith.constant 0 : index
    %c0_2 = arith.constant 0 : index
    %1 = vector.load %arg2[%c0_1, %c0_2] : memref<32x128xf32, #tpu.memory_space<vmem>>, vector<32x128xf32>
    %cst = arith.constant dense<0.000000e+00> : vector<16x128xf32>
    %2 = tpu.matmul %0, %1, %cst {dimension_numbers = #tpu.dot_dimension_numbers<[1], [0], [0], [1], [0, 0, 1, 1], [], []>} : vector<16x32xf32>, vector<32x128xf32>, vector<16x128xf32> -> vector<16x128xf32>
    %c0_3 = arith.constant 0 : index
    %c0_4 = arith.constant 0 : index
    %3 = vector.load %arg3[%c0_3, %c0_4] : memref<1x128xf32, #tpu.memory_space<vmem>>, vector<1x128xf32>
    %4 = vector.broadcast %3 : vector<1x128xf32> to vector<16x128xf32>
    %5 = arith.addf %2, %4 : vector<16x128xf32>
    %6 = math.tanh %5 : vector<16x128xf32>
    %c0_5 = arith.constant 0 : index
    %c0_6 = arith.constant 0 : index
    %7 = vector.load %arg4[%c0_5, %c0_6] : memref<128x128xf32, #tpu.memory_space<vmem>>, vector<128x128xf32>
    %cst_7 = arith.constant dense<0.000000e+00> : vector<16x128xf32>
    %8 = tpu.matmul %6, %7, %cst_7 {dimension_numbers = #tpu.dot_dimension_numbers<[1], [0], [0], [1], [0, 0, 1, 1], [], []>} : vector<16x128xf32>, vector<128x128xf32>, vector<16x128xf32> -> vector<16x128xf32>
    %c0_8 = arith.constant 0 : index
    %c0_9 = arith.constant 0 : index
    %9 = vector.load %arg5[%c0_8, %c0_9] : memref<1x128xf32, #tpu.memory_space<vmem>>, vector<1x128xf32>
    %10 = vector.broadcast %9 : vector<1x128xf32> to vector<16x128xf32>
    %11 = arith.addf %8, %10 : vector<16x128xf32>
    %12 = math.tanh %11 : vector<16x128xf32>
    %c0_10 = arith.constant 0 : index
    %c0_11 = arith.constant 0 : index
    %13 = vector.load %arg6[%c0_10, %c0_11] : memref<128x8xf32, #tpu.memory_space<vmem>>, vector<128x8xf32>
    %cst_12 = arith.constant dense<0.000000e+00> : vector<16x8xf32>
    %14 = tpu.matmul %12, %13, %cst_12 {dimension_numbers = #tpu.dot_dimension_numbers<[1], [0], [0], [1], [0, 0, 1, 1], [], []>} : vector<16x128xf32>, vector<128x8xf32>, vector<16x8xf32> -> vector<16x8xf32>
    %c0_13 = arith.constant 0 : index
    %c0_14 = arith.constant 0 : index
    %15 = vector.load %arg7[%c0_13, %c0_14] : memref<1x8xf32, #tpu.memory_space<vmem>>, vector<1x8xf32>
    %16 = vector.broadcast %15 : vector<1x8xf32> to vector<16x8xf32>
    %17 = arith.addf %14, %16 : vector<16x8xf32>
    %c0_15 = arith.constant 0 : index
    %c0_16 = arith.constant 0 : index
    %18 = vector.load %arg8[%c0_15, %c0_16] : memref<16x8xf32, #tpu.memory_space<vmem>>, vector<16x8xf32>
    tpu.vector_store %arg8[%c0_15, %c0_16], %17 {strides = array<i32>} : memref<16x8xf32, #tpu.memory_space<vmem>>, vector<16x8xf32>,
    return
  }
  func.func @transform_0(%arg0: i32) -> (i32, i32) {
    %c0_i32 = arith.constant 0 : i32
    %c0_i32_0 = arith.constant 0 : i32
    return %arg0, %c0_i32 : i32, i32
  }
  func.func @transform_1(%arg0: i32) -> (i32, i32) {
    %c0_i32 = arith.constant 0 : i32
    %c0_i32_0 = arith.constant 0 : i32
    %c0_i32_1 = arith.constant 0 : i32
    return %c0_i32, %c0_i32_0 : i32, i32
  }
  func.func @transform_2(%arg0: i32) -> (i32, i32) {
    %c0_i32 = arith.constant 0 : i32
    %c0_i32_0 = arith.constant 0 : i32
    %c0_i32_1 = arith.constant 0 : i32
    return %c0_i32, %c0_i32_0 : i32, i32
  }
  func.func @transform_3(%arg0: i32) -> (i32, i32) {
    %c0_i32 = arith.constant 0 : i32
    %c0_i32_0 = arith.constant 0 : i32
    %c0_i32_1 = arith.constant 0 : i32
    return %c0_i32, %c0_i32_0 : i32, i32
  }
  func.func @transform_4(%arg0: i32) -> (i32, i32) {
    %c0_i32 = arith.constant 0 : i32
    %c0_i32_0 = arith.constant 0 : i32
    %c0_i32_1 = arith.constant 0 : i32
    return %c0_i32, %c0_i32_0 : i32, i32
  }
  func.func @transform_5(%arg0: i32) -> (i32, i32) {
    %c0_i32 = arith.constant 0 : i32
    %c0_i32_0 = arith.constant 0 : i32
    %c0_i32_1 = arith.constant 0 : i32
    return %c0_i32, %c0_i32_0 : i32, i32
  }
  func.func @transform_6(%arg0: i32) -> (i32, i32) {
    %c0_i32 = arith.constant 0 : i32
    %c0_i32_0 = arith.constant 0 : i32
    %c0_i32_1 = arith.constant 0 : i32
    return %c0_i32, %c0_i32_0 : i32, i32
  }
  func.func @transform_7(%arg0: i32) -> (i32, i32) {
    %c0_i32 = arith.constant 0 : i32
    %c0_i32_0 = arith.constant 0 : i32
    return %arg0, %c0_i32 : i32, i32
  }
}

</mosaic_0001>

<llo_original>
// kernel: tpu_custom_call.1
$region0: #{tpu_custom_call.1}
  #allocation0 [shape = 'u32[]', space=smem, size = 0x4, offset = 0x4, fixed_abs, tag = 'smem constant byte address 0x4 - core index']
  #allocation1 [shape = 'u32[144,128]{1,0:T(1,128)}', space=vmem, size = 0x12000, scoped, tag = 'internal scratch']
  %s0 = inlined_call_operand.hbm [shape: f32[16,32], index: 0, kind: input, shape index: {}]
  %s1 = inlined_call_operand.hbm [shape: f32[32,128], index: 1, kind: input, shape index: {}]
  %s2 = inlined_call_operand.vmem [shape: f32[1,128], index: 2, kind: input, shape index: {}]
  %s3 = inlined_call_operand.vmem [shape: f32[128,128], index: 3, kind: input, shape index: {}]
  %s4 = inlined_call_operand.vmem [shape: f32[1,128], index: 4, kind: input, shape index: {}]
  %s5 = inlined_call_operand.vmem [shape: f32[128,8], index: 5, kind: input, shape index: {}]
  %s6 = inlined_call_operand.vmem [shape: f32[1,8], index: 6, kind: input, shape index: {}]
  %s7 = inlined_call_operand.vmem [shape: f32[16,8], index: 7, kind: output, shape index: {}]
  %s8 = sld [smem:[#allocation0]]
  $region46: #{tpu_custom_call.1} parent=0
    _
  %s10 = ssub.s32 1, %s8
  %s11 = scalar_select 0, %s10, %s8
  $region1: #{tpu_custom_call.1} parent=0
    #allocation2 [shape = 'u8[8192]{0}', space=vmem, size = 0x2000, scoped, tag = 'input window, operand 0, single buffered']
    #allocation3 [shape = 's32[1]{0}', space=sflag, size = 0x4, scoped, tag = 'scoped memory for tpu_custom_call.1']
    #allocation4 [shape = 'u8[16384]{0}', space=vmem, size = 0x4000, scoped, tag = 'input window, operand 1, single buffered']
    #allocation5 [shape = 's32[1]{0}', space=sflag, size = 0x4, scoped, tag = 'scoped memory for tpu_custom_call.1']
    %12 = vsyncpa [#allocation3], 0
    %13 = vsyncpa [#allocation5], 0
    // Predicated region
    $region2: #{tpu_custom_call.1} parent=1 // pred_check
      _
    $region3: #{tpu_custom_call.1} parent=1 // pred_check_branch
      %15 = sbr.rel (0) target = $region5
    $region4: #{tpu_custom_call.1} parent=1 // pred_region
      %s17 = ssub.s32 256, 256
      %18 = vsyncadd [#allocation3], %s17
      %s19 = sshll.u32 [#allocation2], 4
      %s20 = int_to_ptr.vmem [resolvable:$true] %s19
      %25 = dma.hbm_to_vmem [thread:$0]  %s0, 256, %s20, [#allocation3], 128, 128, 8
    $region5: #{tpu_custom_call.1} parent=1 // pred_fallthru
      _
    // Predicated region
    $region6: #{tpu_custom_call.1} parent=1 // pred_check
      _
    $region7: #{tpu_custom_call.1} parent=1 // pred_check_branch
      %27 = sbr.rel (0) target = $region9
    $region8: #{tpu_custom_call.1} parent=1 // pred_region
      %s29 = ssub.s32 512, 512
      %30 = vsyncadd [#allocation5], %s29
      %s31 = sshll.u32 [#allocation4], 4
      %s32 = int_to_ptr.vmem [resolvable:$true] %s31
      %37 = dma.hbm_to_vmem [thread:$0]  %s1, 512, %s32, [#allocation5], 128, 128, 8
    $region9: #{tpu_custom_call.1} parent=1 // pred_fallthru
      _
    // Predicated region
    $region10: #{tpu_custom_call.1} parent=1 // pred_check
      _
    $region11: #{tpu_custom_call.1} parent=1 // pred_check_branch
      %39 = sbr.rel (0) target = $region13
    $region12: #{tpu_custom_call.1} parent=1 // pred_region
      _
    $region13: #{tpu_custom_call.1} parent=1 // pred_fallthru
      _
    // Predicated region
    $region14: #{tpu_custom_call.1} parent=1 // pred_check
      _
    $region15: #{tpu_custom_call.1} parent=1 // pred_check_branch
      %41 = sbr.rel (0) target = $region17
    $region16: #{tpu_custom_call.1} parent=1 // pred_region
      _
    $region17: #{tpu_custom_call.1} parent=1 // pred_fallthru
      _
    // Predicated region
    $region18: #{tpu_custom_call.1} parent=1 // pred_check
      _
    $region19: #{tpu_custom_call.1} parent=1 // pred_check_branch
      %43 = sbr.rel (0) target = $region21
    $region20: #{tpu_custom_call.1} parent=1 // pred_region
      _
    $region21: #{tpu_custom_call.1} parent=1 // pred_fallthru
      _
    // Predicated region
    $region22: #{tpu_custom_call.1} parent=1 // pred_check
      _
    $region23: #{tpu_custom_call.1} parent=1 // pred_check_branch
      %45 = sbr.rel (0) target = $region25
    $region24: #{tpu_custom_call.1} parent=1 // pred_region
      _
    $region25: #{tpu_custom_call.1} parent=1 // pred_fallthru
      _
    // Predicated region
    $region26: #{tpu_custom_call.1} parent=1 // pred_check
      _
    $region27: #{tpu_custom_call.1} parent=1 // pred_check_branch
      %47 = sbr.rel (0) target = $region29
    $region28: #{tpu_custom_call.1} parent=1 // pred_region
      _
    $region29: #{tpu_custom_call.1} parent=1 // pred_fallthru
      _
    // Predicated region
    $region30: #{tpu_custom_call.1} parent=1 // pred_check
      _
    $region31: #{tpu_custom_call.1} parent=1 // pred_check_branch
      %49 = sbr.rel (0) target = $region33
    $region32: #{tpu_custom_call.1} parent=1 // pred_region
      %50 = dma.done [#allocation3], 256
    $region33: #{tpu_custom_call.1} parent=1 // pred_fallthru
      _
    // Predicated region
    $region34: #{tpu_custom_call.1} parent=1 // pred_check
      _
    $region35: #{tpu_custom_call.1} parent=1 // pred_check_branch
      %52 = sbr.rel (0) target = $region37
    $region36: #{tpu_custom_call.1} parent=1 // pred_region
      %53 = dma.done [#allocation5], 512
    $region37: #{tpu_custom_call.1} parent=1 // pred_fallthru
      _
    %v54 = vld [vmem:[#allocation2] sm:$0xff]
    %v55 = vld [vmem:[#allocation2 + $0x8] sm:$0xff]
    %v56 = vld [vmem:[#allocation4] sm:$0xff]
    %v57 = vld [vmem:[#allocation4 + $0x8] sm:$0xff]
    %v58 = vld [vmem:[#allocation4 + $0x10] sm:$0xff]
    %v59 = vld [vmem:[#allocation4 + $0x18] sm:$0xff]
    %v60 = vld [vmem:[%s2] sm:$0x1]
    %v62 = vlaneseq
    %v63 = vshrl.u32 %v62, 7
    %v64 = vsub.s32 0, %v63
    %v65 = vrot.slane %v60, %v64
    %vm67 = vcmask 261120
    %v69 = vsel %vm67, %v54, 0
    %v72 = vsel %vm67, %v55, 0
    %74 = vmatprep.subr.mxu0 0.0
    %75 = vmatpush1.msra.mxu0 0.0
    %76 = vmatprep.subr.mxu0 0.0
    %77 = vmatpush1.msra.mxu0 0.0
    %78 = vmatprep.subr.mxu0 0.0
    %79 = vmatpush1.msra.mxu0 0.0
    %80 = vmatprep.subr.mxu0 0.0
    %81 = vmatpush1.msra.mxu0 0.0
    %82 = vmatprep.subr.mxu0 0.0
    %83 = vmatpush1.msra.mxu0 0.0
    %84 = vmatprep.subr.mxu0 0.0
    %85 = vmatpush1.msra.mxu0 0.0
    %86 = vmatprep.subr.mxu0 0.0
    %87 = vmatpush1.msra.mxu0 0.0
    %88 = vmatprep.subr.mxu0 0.0
    %89 = vmatpush1.msra.mxu0 0.0
    %90 = vmatprep.subr.mxu0 0.0
    %91 = vmatpush1.msra.mxu0 0.0
    %92 = vmatprep.subr.mxu0 0.0
    %93 = vmatpush1.msra.mxu0 0.0
    %94 = vmatprep.subr.mxu0 0.0
    %95 = vmatpush1.msra.mxu0 0.0
    %96 = vmatprep.subr.mxu0 0.0
    %97 = vmatpush1.msra.mxu0 0.0
    %98 = vmatprep.subr.mxu0 0.0
    %99 = vmatpush1.msra.mxu0 %v59
    %100 = vmatprep.subr.mxu0 0.0
    %101 = vmatpush1.msra.mxu0 %v58
    %102 = vmatprep.subr.mxu0 0.0
    %103 = vmatpush1.msra.mxu0 %v57
    %104 = vmatprep.subr.mxu0 0.0
    %105 = vmatpush1.msra.mxu0 %v56
    %106 = vmatprep.subr.mxu0 0.0
    %107 = vmatpush2.msra.mxu0 0.0
    %108 = vmatprep.subr.mxu0 0.0
    %109 = vmatpush2.msra.mxu0 0.0
    %110 = vmatprep.subr.mxu0 0.0
    %111 = vmatpush2.msra.mxu0 0.0
    %112 = vmatprep.subr.mxu0 0.0
    %113 = vmatpush2.msra.mxu0 0.0
    %114 = vmatprep.subr.mxu0 0.0
    %115 = vmatpush2.msra.mxu0 0.0
    %116 = vmatprep.subr.mxu0 0.0
    %117 = vmatpush2.msra.mxu0 0.0
    %118 = vmatprep.subr.mxu0 0.0
    %119 = vmatpush2.msra.mxu0 0.0
    %120 = vmatprep.subr.mxu0 0.0
    %121 = vmatpush2.msra.mxu0 0.0
    %122 = vmatprep.subr.mxu0 0.0
    %123 = vmatpush2.msra.mxu0 0.0
    %124 = vmatprep.subr.mxu0 0.0
    %125 = vmatpush2.msra.mxu0 0.0
    %126 = vmatprep.subr.mxu0 0.0
    %127 = vmatpush2.msra.mxu0 0.0
    %128 = vmatprep.subr.mxu0 0.0
    %129 = vmatpush2.msra.mxu0 0.0
    %130 = vmatprep.subr.mxu0 0.0
    %131 = vmatpush2.msra.mxu0 0.0
    %132 = vmatprep.subr.mxu0 0.0
    %133 = vmatpush2.msra.mxu0 0.0
    %134 = vmatprep.subr.mxu0 0.0
    %135 = vmatpush2.msra.mxu0 0.0
    %136 = vmatprep.subr.mxu0 0.0
    %137 = vmatpush2.msra.mxu0 0.0
    %138 = vmatprep.mubr.f32.mxu0 0.0
    %139 = vmatmul.mubr.f32.gmra.mxu0 %v69
    %v140 = vpop.f32.mrf.mxu0
    %v141 = vadd.f32 %v65, %v140
    %v142 = vpop.f32.mrf.mxu0
    %143 = vmatprep.mubr.f32.mxu0 0.0
    %144 = vmatmul.mubr.f32.gmra.mxu0 %v72
    %v145 = vpop.f32.mrf.mxu0
    %v146 = vadd.f32 %v65, %v145
    %v147 = vpop.f32.mrf.mxu0
    %148 = vdwg.mxu0
    %v149 = vtanh.pop %v141
    %v150 = vtanh.pop %v146
    %v151 = vld [vmem:[%s3] sm:$0xff]
    %v152 = vld [vmem:[%s3 + $0x8] sm:$0xff]
    %v153 = vld [vmem:[%s3 + $0x10] sm:$0xff]
    %v154 = vld [vmem:[%s3 + $0x18] sm:$0xff]
    %v155 = vld [vmem:[%s3 + $0x20] sm:$0xff]
    %v156 = vld [vmem:[%s3 + $0x28] sm:$0xff]
    %v157 = vld [vmem:[%s3 + $0x30] sm:$0xff]
    %v158 = vld [vmem:[%s3 + $0x38] sm:$0xff]
    %v159 = vld [vmem:[%s3 + $0x40] sm:$0xff]
    %v160 = vld [vmem:[%s3 + $0x48] sm:$0xff]
    %v161 = vld [vmem:[%s3 + $0x50] sm:$0xff]
    %v162 = vld [vmem:[%s3 + $0x58] sm:$0xff]
    %v163 = vld [vmem:[%s3 + $0x60] sm:$0xff]
    %v164 = vld [vmem:[%s3 + $0x68] sm:$0xff]
    %v165 = vld [vmem:[%s3 + $0x70] sm:$0xff]
    %v166 = vld [vmem:[%s3 + $0x78] sm:$0xff]
    %v167 = vld [vmem:[%s4] sm:$0x1]
    %v169 = vlaneseq
    %v170 = vshrl.u32 %v169, 7
    %v171 = vsub.s32 0, %v170
    %v172 = vrot.slane %v167, %v171
    %174 = vmatprep.subr.mxu0 0.0
    %175 = vmatpush1.msra.mxu0 %v166
    %176 = vmatprep.subr.mxu0 0.0
    %177 = vmatpush1.msra.mxu0 %v165
    %178 = vmatprep.subr.mxu0 0.0
    %179 = vmatpush1.msra.mxu0 %v164
    %180 = vmatprep.subr.mxu0 0.0
    %181 = vmatpush1.msra.mxu0 %v163
    %182 = vmatprep.subr.mxu0 0.0
    %183 = vmatpush1.msra.mxu0 %v162
    %184 = vmatprep.subr.mxu0 0.0
    %185 = vmatpush1.msra.mxu0 %v161
    %186 = vmatprep.subr.mxu0 0.0
    %187 = vmatpush1.msra.mxu0 %v160
    %188 = vmatprep.subr.mxu0 0.0
    %189 = vmatpush1.msra.mxu0 %v159
    %190 = vmatprep.subr.mxu0 0.0
    %191 = vmatpush1.msra.mxu0 %v158
    %192 = vmatprep.subr.mxu0 0.0
    %193 = vmatpush1.msra.mxu0 %v157
    %194 = vmatprep.subr.mxu0 0.0
    %195 = vmatpush1.msra.mxu0 %v156
    %196 = vmatprep.subr.mxu0 0.0
    %197 = vmatpush1.msra.mxu0 %v155
    %198 = vmatprep.subr.mxu0 0.0
    %199 = vmatpush1.msra.mxu0 %v154
    %200 = vmatprep.subr.mxu0 0.0
    %201 = vmatpush1.msra.mxu0 %v153
    %202 = vmatprep.subr.mxu0 0.0
    %203 = vmatpush1.msra.mxu0 %v152
    %204 = vmatprep.subr.mxu0 0.0
    %205 = vmatpush1.msra.mxu0 %v151
    %206 = vmatprep.subr.mxu0 0.0
    %207 = vmatpush2.msra.mxu0 0.0
    %208 = vmatprep.subr.mxu0 0.0
    %209 = vmatpush2.msra.mxu0 0.0
    %210 = vmatprep.subr.mxu0 0.0
    %211 = vmatpush2.msra.mxu0 0.0
    %212 = vmatprep.subr.mxu0 0.0
    %213 = vmatpush2.msra.mxu0 0.0
    %214 = vmatprep.subr.mxu0 0.0
    %215 = vmatpush2.msra.mxu0 0.0
    %216 = vmatprep.subr.mxu0 0.0
    %217 = vmatpush2.msra.mxu0 0.0
    %218 = vmatprep.subr.mxu0 0.0
    %219 = vmatpush2.msra.mxu0 0.0
    %220 = vmatprep.subr.mxu0 0.0
    %221 = vmatpush2.msra.mxu0 0.0
    %222 = vmatprep.subr.mxu0 0.0
    %223 = vmatpush2.msra.mxu0 0.0
    %224 = vmatprep.subr.mxu0 0.0
    %225 = vmatpush2.msra.mxu0 0.0
    %226 = vmatprep.subr.mxu0 0.0
    %227 = vmatpush2.msra.mxu0 0.0
    %228 = vmatprep.subr.mxu0 0.0
    %229 = vmatpush2.msra.mxu0 0.0
    %230 = vmatprep.subr.mxu0 0.0
    %231 = vmatpush2.msra.mxu0 0.0
    %232 = vmatprep.subr.mxu0 0.0
    %233 = vmatpush2.msra.mxu0 0.0
    %234 = vmatprep.subr.mxu0 0.0
    %235 = vmatpush2.msra.mxu0 0.0
    %236 = vmatprep.subr.mxu0 0.0
    %237 = vmatpush2.msra.mxu0 0.0
    %238 = vmatprep.mubr.f32.mxu0 0.0
    %239 = vmatmul.mubr.f32.gmra.mxu0 %v149
    %v240 = vpop.f32.mrf.mxu0
    %v241 = vadd.f32 %v172, %v240
    %v242 = vpop.f32.mrf.mxu0
    %243 = vmatprep.mubr.f32.mxu0 0.0
    %244 = vmatmul.mubr.f32.gmra.mxu0 %v150
    %v245 = vpop.f32.mrf.mxu0
    %v246 = vadd.f32 %v172, %v245
    %v247 = vpop.f32.mrf.mxu0
    %248 = vdwg.mxu0
    %v249 = vtanh.pop %v241
    %v250 = vtanh.pop %v246
    %v251 = vld [vmem:[%s5] sm:$0xff]
    %v252 = vld [vmem:[%s5 + $0x8] sm:$0xff]
    %v253 = vld [vmem:[%s5 + $0x10] sm:$0xff]
    %v254 = vld [vmem:[%s5 + $0x18] sm:$0xff]
    %v255 = vld [vmem:[%s5 + $0x20] sm:$0xff]
    %v256 = vld [vmem:[%s5 + $0x28] sm:$0xff]
    %v257 = vld [vmem:[%s5 + $0x30] sm:$0xff]
    %v258 = vld [vmem:[%s5 + $0x38] sm:$0xff]
    %v259 = vld [vmem:[%s5 + $0x40] sm:$0xff]
    %v260 = vld [vmem:[%s5 + $0x48] sm:$0xff]
    %v261 = vld [vmem:[%s5 + $0x50] sm:$0xff]
    %v262 = vld [vmem:[%s5 + $0x58] sm:$0xff]
    %v263 = vld [vmem:[%s5 + $0x60] sm:$0xff]
    %v264 = vld [vmem:[%s5 + $0x68] sm:$0xff]
    %v265 = vld [vmem:[%s5 + $0x70] sm:$0xff]
    %v266 = vld [vmem:[%s5 + $0x78] sm:$0xff]
    %v267 = vld [vmem:[%s6] sm:$0x1]
    %v269 = vlaneseq
    %v270 = vshrl.u32 %v269, 7
    %v271 = vsub.s32 0, %v270
    %v272 = vrot.slane %v267, %v271
    %274 = vmatprep.subr.mxu0 0.0
    %275 = vmatpush1.msra.mxu0 %v266
    %276 = vmatprep.subr.mxu0 0.0
    %277 = vmatpush1.msra.mxu0 %v265
    %278 = vmatprep.subr.mxu0 0.0
    %279 = vmatpush1.msra.mxu0 %v264
    %280 = vmatprep.subr.mxu0 0.0
    %281 = vmatpush1.msra.mxu0 %v263
    %282 = vmatprep.subr.mxu0 0.0
    %283 = vmatpush1.msra.mxu0 %v262
    %284 = vmatprep.subr.mxu0 0.0
    %285 = vmatpush1.msra.mxu0 %v261
    %286 = vmatprep.subr.mxu0 0.0
    %287 = vmatpush1.msra.mxu0 %v260
    %288 = vmatprep.subr.mxu0 0.0
    %289 = vmatpush1.msra.mxu0 %v259
    %290 = vmatprep.subr.mxu0 0.0
    %291 = vmatpush1.msra.mxu0 %v258
    %292 = vmatprep.subr.mxu0 0.0
    %293 = vmatpush1.msra.mxu0 %v257
    %294 = vmatprep.subr.mxu0 0.0
    %295 = vmatpush1.msra.mxu0 %v256
    %296 = vmatprep.subr.mxu0 0.0
    %297 = vmatpush1.msra.mxu0 %v255
    %298 = vmatprep.subr.mxu0 0.0
    %299 = vmatpush1.msra.mxu0 %v254
    %300 = vmatprep.subr.mxu0 0.0
    %301 = vmatpush1.msra.mxu0 %v253
    %302 = vmatprep.subr.mxu0 0.0
    %303 = vmatpush1.msra.mxu0 %v252
    %304 = vmatprep.subr.mxu0 0.0
    %305 = vmatpush1.msra.mxu0 %v251
    %306 = vmatprep.subr.mxu0 0.0
    %307 = vmatpush2.msra.mxu0 0.0
    %308 = vmatprep.subr.mxu0 0.0
    %309 = vmatpush2.msra.mxu0 0.0
    %310 = vmatprep.subr.mxu0 0.0
    %311 = vmatpush2.msra.mxu0 0.0
    %312 = vmatprep.subr.mxu0 0.0
    %313 = vmatpush2.msra.mxu0 0.0
    %314 = vmatprep.subr.mxu0 0.0
    %315 = vmatpush2.msra.mxu0 0.0
    %316 = vmatprep.subr.mxu0 0.0
    %317 = vmatpush2.msra.mxu0 0.0
    %318 = vmatprep.subr.mxu0 0.0
    %319 = vmatpush2.msra.mxu0 0.0
    %320 = vmatprep.subr.mxu0 0.0
    %321 = vmatpush2.msra.mxu0 0.0
    %322 = vmatprep.subr.mxu0 0.0
    %323 = vmatpush2.msra.mxu0 0.0
    %324 = vmatprep.subr.mxu0 0.0
    %325 = vmatpush2.msra.mxu0 0.0
    %326 = vmatprep.subr.mxu0 0.0
    %327 = vmatpush2.msra.mxu0 0.0
    %328 = vmatprep.subr.mxu0 0.0
    %329 = vmatpush2.msra.mxu0 0.0
    %330 = vmatprep.subr.mxu0 0.0
    %331 = vmatpush2.msra.mxu0 0.0
    %332 = vmatprep.subr.mxu0 0.0
    %333 = vmatpush2.msra.mxu0 0.0
    %334 = vmatprep.subr.mxu0 0.0
    %335 = vmatpush2.msra.mxu0 0.0
    %336 = vmatprep.subr.mxu0 0.0
    %337 = vmatpush2.msra.mxu0 0.0
    %338 = vmatprep.mubr.f32.mxu0 0.0
    %339 = vmatmul.mubr.f32.gmra.mxu0 %v249
    %v340 = vpop.f32.mrf.mxu0
    %v341 = vadd.f32 %v272, %v340
    %v342 = vpop.f32.mrf.mxu0
    %343 = vmatprep.mubr.f32.mxu0 0.0
    %344 = vmatmul.mubr.f32.gmra.mxu0 %v250
    %v345 = vpop.f32.mrf.mxu0
    %v346 = vadd.f32 %v272, %v345
    %v347 = vpop.f32.mrf.mxu0
    %348 = vdwg.mxu0
    %vm349 = vcmask 64512
    %350 = vst.msk [vmem:[%s7] sm:$0xff] %vm349, %v341
    %351 = vst.msk [vmem:[%s7 + $0x8] sm:$0xff] %vm349, %v346
    // Predicated region
    $region38: #{tpu_custom_call.1} parent=1 // pred_check
      _
    $region39: #{tpu_custom_call.1} parent=1 // pred_check_branch
      %353 = sbr.rel (0) target = $region41
    $region40: #{tpu_custom_call.1} parent=1 // pred_region
      _
    $region41: #{tpu_custom_call.1} parent=1 // pred_fallthru
      _
    // Predicated region
    $region42: #{tpu_custom_call.1} parent=1 // pred_check
      _
    $region43: #{tpu_custom_call.1} parent=1 // pred_check_branch
      %355 = sbr.rel (0) target = $region45
    $region44: #{tpu_custom_call.1} parent=1 // pred_region
      _
    $region45: #{tpu_custom_call.1} parent=1 // pred_fallthru
      _
    %356 = vsyncpa [#allocation3], 1
    %357 = vsyncpa [#allocation5], 1

</llo_original>
